<compile_context>
chip_gen: v5e
topology: v5e:2x2
jax: 0.10.0
libtpu: 0.0.40
codegen_flags: <defaults>
</compile_context>

<pallas_src>
import functools

import jax
import jax.numpy as jnp
from jax.experimental import pallas as pl
from jax.experimental.pallas import tpu as pltpu


_NEG_PAD = -1e30  # bias pad for lanes added to round d_expert up to 128


def _round_up(n: int, m: int) -> int:
    return ((n + m - 1) // m) * m


# ------------------------- fused expert MoE kernel --------------------------
def _moe_fused_kernel(x_ref, win_ref, bin_ref, wout_ref, comb_ref, o_ref,
                      *, n_experts, d_expert):
    # pre = x @ W_in_stacked + b_in_stacked           [tb, E*de], f32 acc
    pre = jnp.dot(x_ref[...], win_ref[...],
                  preferred_element_type=jnp.float32) + bin_ref[...]
    comb = comb_ref[...]                               # [tb, E] f32

    # SoLU per expert slab (softmax over that expert's d_expert lanes, * pre),
    # scaled by that token's combine weight for expert e, so the second matmul
    # directly yields the combined output (no accumulator scratch).
    # d_expert is a 128-multiple here, so every slice and the concat below is
    # vreg-aligned (no cross-tile copies).  E is tiny -> fully unrolled.
    slabs = []
    for e in range(n_experts):
        s = pre[:, e * d_expert:(e + 1) * d_expert]    # [tb, de]
        m = jnp.max(s, axis=-1, keepdims=True)
        ex = jnp.exp(s - m)
        probs = ex / jnp.sum(ex, axis=-1, keepdims=True)   # exact divide (tol)
        w_e = comb[:, e:e + 1]                         # [tb, 1] -> lane bcast
        slabs.append(probs * s * w_e)

    acts = jnp.concatenate(slabs, axis=-1)             # [tb, E*de]
    o_ref[...] = jnp.dot(acts.astype(wout_ref.dtype), wout_ref[...],
                         preferred_element_type=jnp.float32)


def moe_experts_fused(x, w_in, b_in, w_out, comb, *, n_experts, d_expert,
                      batch_tile):
    """One pallas_call: x@[d_in,E*de] -> slab SoLU -> *comb -> @[E*de,d_out]."""
    B, d_in = x.shape
    d_hidden = n_experts * d_expert
    d_out = w_out.shape[1]
    assert B % batch_tile == 0 and batch_tile % 8 == 0

    kernel = functools.partial(_moe_fused_kernel,
                               n_experts=n_experts, d_expert=d_expert)
    return pl.pallas_call(
        kernel,
        out_shape=jax.ShapeDtypeStruct((B, d_out), jnp.float32),
        grid=(B // batch_tile,),
        in_specs=[
            pl.BlockSpec((batch_tile, d_in), lambda b: (b, 0)),       # x tile
            pl.BlockSpec((d_in, d_hidden), lambda b: (0, 0)),         # W_in
            pl.BlockSpec((1, d_hidden), lambda b: (0, 0)),            # b_in
            pl.BlockSpec((d_hidden, d_out), lambda b: (0, 0)),        # W_out
            pl.BlockSpec((batch_tile, n_experts), lambda b: (b, 0)),  # comb
        ],
        out_specs=pl.BlockSpec((batch_tile, d_out), lambda b: (b, 0)),
        compiler_params=pltpu.CompilerParams(
            # batch tiles are independent -> shard across v7x's 2 TensorCores
            dimension_semantics=("parallel",),
            # explicit headroom; v7x physical VMEM is 64 MiB.
            vmem_limit_bytes=64 * 1024 * 1024,
        ),
    )(x, w_in, b_in, w_out, comb)


# ------------------------------ full forward --------------------------------
@functools.partial(jax.jit,
                   static_argnames=("k_experts", "batch_tile", "mxu_dtype"))
def moe_layer_forward(x, params, k_experts, batch_tile=None, mxu_dtype=None):
    """Eval-mode MoeLayer.forward(x) -> (outputs, load_balancing_loss)."""
    n_experts, d_in, d_expert = params["w_in_t"].shape
    d_out = params["w_out_t"].shape[2]
    B = x.shape[0]

    # ---- routing: tiny [B, n_experts] math, kept in XLA (a pallas_call
    # launch costs more than this matmul + softmax/top-k, and its output is
    # lane-sparse).
    logits = x @ params["wg_t"] + params["bg"]
    expert_probs = jax.nn.softmax(logits, axis=-1)                  # [B, E]
    k_probs, k_idx = jax.lax.top_k(expert_probs, k_experts)         # [B, k]
    k_weights = k_probs / jnp.sum(k_probs, axis=-1, keepdims=True)
    one_hot = jax.nn.one_hot(k_idx, n_experts, dtype=jnp.float32)   # [B, k, E]
    comb = jnp.sum(one_hot * k_weights[..., None], axis=1)          # [B, E]

    expert_counts = jnp.sum(one_hot.reshape(-1, n_experts), axis=0)  # [E]
    load_balancing_loss = n_experts * jnp.sum(
        expert_counts / B * jnp.mean(expert_probs, axis=0))

    # ---- lane-dense padding + expert stacking (layout plumbing; in prod,
    # pre-pad / pre-stack / pre-cast the weights OFFLINE instead of per call).
    d_in_p = _round_up(d_in, 128)
    de_p = _round_up(d_expert, 128)
    d_out_p = _round_up(d_out, 128)

    if batch_tile is None:
        # >= 2 grid steps (pipelining + v7x 2-TC split); 256-row tiles fill the
        # v6e/v7x 2x256x256 MXU once B is big enough; 128-multiples suit v5e.
        batch_tile = 256 if B > 256 else max(8, _round_up((B + 1) // 2, 8))
    B_p = max(_round_up(B, batch_tile), 2 * batch_tile)

    w_dtype = jnp.float32 if mxu_dtype is None else mxu_dtype

    # W_in: [E, d_in, de] -> zero-pad -> expert-major stacked [d_in_p, E*de_p]
    w_in_p = jnp.zeros((n_experts, d_in_p, de_p), w_dtype)
    w_in_p = w_in_p.at[:, :d_in, :d_expert].set(params["w_in_t"].astype(w_dtype))
    w_in_stacked = w_in_p.transpose(1, 0, 2).reshape(d_in_p, n_experts * de_p)

    # b_in: pad lanes get a large negative so each slab softmax is unchanged
    # (exp underflows to exactly 0); kept f32 (added after the f32 MXU acc).
    b_in_p = jnp.full((n_experts, de_p), _NEG_PAD, jnp.float32)
    b_in_p = b_in_p.at[:, :d_expert].set(params["b_in"])
    b_in_stacked = b_in_p.reshape(1, n_experts * de_p)

    # W_out: zero-pad rows (padded activation lanes) and cols (padded outputs).
    w_out_p = jnp.zeros((n_experts, de_p, d_out_p), w_dtype)
    w_out_p = w_out_p.at[:, :d_expert, :d_out].set(
        params["w_out_t"].astype(w_dtype))
    w_out_stacked = w_out_p.reshape(n_experts * de_p, d_out_p)

    # x / comb padded to the (batch-tiled) grid extent; pad rows are sliced off.
    x_p = jnp.zeros((B_p, d_in_p), w_dtype).at[:B, :d_in].set(x.astype(w_dtype))
    comb_p = jnp.zeros((B_p, n_experts), jnp.float32).at[:B].set(comb)

    out_p = moe_experts_fused(
        x_p, w_in_stacked, b_in_stacked, w_out_stacked, comb_p,
        n_experts=n_experts, d_expert=de_p, batch_tile=batch_tile)

    return out_p[:B, :d_out], load_balancing_loss


# ------------------------------ reference ----------------------------------
def moe_layer_reference(x, params, k_experts):
    n_experts = params["w_in_t"].shape[0]
    B = x.shape[0]
    logits = x @ params["wg_t"] + params["bg"]
    probs = jax.nn.softmax(logits, axis=-1)
    k_probs, k_idx = jax.lax.top_k(probs, k_experts)
    k_w = k_probs / jnp.sum(k_probs, axis=-1, keepdims=True)
    one_hot = jax.nn.one_hot(k_idx, n_experts, dtype=jnp.float32)
    comb = jnp.sum(one_hot * k_w[..., None], axis=1)
    counts = jnp.sum(one_hot.reshape(-1, n_experts), axis=0)
    loss = n_experts * jnp.sum(counts / B * jnp.mean(probs, axis=0))

    pre = jnp.einsum("bi,eij->bej", x, params["w_in_t"]) + params["b_in"][None]
    sm = jax.nn.softmax(pre, axis=-1)
    acts = sm * pre
    y = jnp.einsum("bej,ejo->beo", acts, params["w_out_t"])
    out = jnp.sum(comb[:, :, None] * y, axis=1)
    return out, loss


# --------------------------------- main -------------------------------------
if __name__ == "__main__":
    B, d_in, d_out = 8, 32, 32
    n_experts, d_expert, k_experts = 4, 64, 2

    key = jax.random.PRNGKey(0)
    kx, k1, k2, k3, k4 = jax.random.split(key, 5)

    x = jax.random.normal(kx, (B, d_in), dtype=jnp.float32)

    params = {
        # experts_w_in: n_experts Linear(d_in, d_expert); bias filled w/ 0.0
        "w_in_t": 0.1 * jax.random.normal(k1, (n_experts, d_in, d_expert),
                                          dtype=jnp.float32),
        "b_in": jnp.zeros((n_experts, d_expert), dtype=jnp.float32),
        # experts_w_out: n_experts Linear(d_expert, d_out, bias=False)
        "w_out_t": 0.1 * jax.random.normal(k2, (n_experts, d_expert, d_out),
                                           dtype=jnp.float32),
        # gate: Linear(d_in, n_experts)
        "wg_t": 0.1 * jax.random.normal(k3, (d_in, n_experts),
                                        dtype=jnp.float32),
        "bg": 0.1 * jax.random.normal(k4, (n_experts,), dtype=jnp.float32),
    }

    out, lbl = moe_layer_forward(x, params, k_experts)
    jax.block_until_ready((out, lbl))

    ref_out, ref_lbl = moe_layer_reference(x, params, k_experts)
    assert out.shape == (B, d_out)
    assert jnp.allclose(out, ref_out, atol=1e-4, rtol=1e-4), "output mismatch"
    assert jnp.allclose(lbl, ref_lbl, atol=1e-5, rtol=1e-5), "loss mismatch"

    print("KERNEL_OK")
</pallas_src>

<mosaic_0001>
module attributes {stable_mosaic.version = 11 : i64} {
  func.func @_moe_fused_kernel(%arg0: i32, %arg1: memref<8x128xf32, #tpu.memory_space<vmem>>, %arg2: memref<128x512xf32, #tpu.memory_space<vmem>>, %arg3: memref<1x512xf32, #tpu.memory_space<vmem>>, %arg4: memref<512x128xf32, #tpu.memory_space<vmem>>, %arg5: memref<8x4xf32, #tpu.memory_space<vmem>>, %arg6: memref<8x128xf32, #tpu.memory_space<vmem>>) attributes {dimension_semantics = [#tpu.dimension_semantics<parallel>], iteration_bounds = array<i64: 2>, scalar_prefetch = 0 : i64, scratch_operands = 0 : i64, tpu.core_type = #tpu.core_type<tc>, window_params = [{transform_indices = @transform_0, window_bounds = array<i64: 8, 128>}, {pipeline_mode = #tpu.pipeline_mode<synchronous>, transform_indices = @transform_1, window_bounds = array<i64: 128, 512>}, {pipeline_mode = #tpu.pipeline_mode<synchronous>, transform_indices = @transform_2, window_bounds = array<i64: 1, 512>}, {pipeline_mode = #tpu.pipeline_mode<synchronous>, transform_indices = @transform_3, window_bounds = array<i64: 512, 128>}, {transform_indices = @transform_4, window_bounds = array<i64: 8, 4>}, {transform_indices = @transform_5, window_bounds = array<i64: 8, 128>}]} {
    %c0 = arith.constant 0 : index
    %c0_0 = arith.constant 0 : index
    %0 = vector.load %arg1[%c0, %c0_0] : memref<8x128xf32, #tpu.memory_space<vmem>>, vector<8x128xf32>
    %c0_1 = arith.constant 0 : index
    %c0_2 = arith.constant 0 : index
    %1 = vector.load %arg2[%c0_1, %c0_2] : memref<128x512xf32, #tpu.memory_space<vmem>>, vector<128x512xf32>
    %cst = arith.constant dense<0.000000e+00> : vector<8x512xf32>
    %2 = tpu.matmul %0, %1, %cst {dimension_numbers = #tpu.dot_dimension_numbers<[1], [0], [0], [1], [0, 0, 1, 1], [], []>} : vector<8x128xf32>, vector<128x512xf32>, vector<8x512xf32> -> vector<8x512xf32>
    %c0_3 = arith.constant 0 : index
    %c0_4 = arith.constant 0 : index
    %3 = vector.load %arg3[%c0_3, %c0_4] : memref<1x512xf32, #tpu.memory_space<vmem>>, vector<1x512xf32>
    %4 = vector.broadcast %3 : vector<1x512xf32> to vector<8x512xf32>
    %5 = arith.addf %2, %4 : vector<8x512xf32>
    %c0_5 = arith.constant 0 : index
    %c0_6 = arith.constant 0 : index
    %6 = vector.load %arg5[%c0_5, %c0_6] : memref<8x4xf32, #tpu.memory_space<vmem>>, vector<8x4xf32>
    %7 = vector.extract_strided_slice %5 {offsets = [0, 0], sizes = [8, 128], strides = [1, 1]} : vector<8x512xf32> to vector<8x128xf32>
    %cst_7 = arith.constant dense<0xFF800000> : vector<8xf32>
    %8 = vector.multi_reduction <maximumf>, %7, %cst_7 [1] : vector<8x128xf32> to vector<8xf32>
    %9 = vector.shape_cast %8 : vector<8xf32> to vector<8x1xf32>
    %10 = vector.broadcast %9 : vector<8x1xf32> to vector<8x128xf32>
    %11 = arith.subf %7, %10 : vector<8x128xf32>
    %12 = math.exp %11 : vector<8x128xf32>
    %cst_8 = arith.constant dense<0.000000e+00> : vector<8xf32>
    %13 = vector.multi_reduction <add>, %12, %cst_8 [1] : vector<8x128xf32> to vector<8xf32>
    %14 = vector.shape_cast %13 : vector<8xf32> to vector<8x1xf32>
    %15 = vector.broadcast %14 : vector<8x1xf32> to vector<8x128xf32>
    %16 = arith.divf %12, %15 : vector<8x128xf32>
    %17 = vector.extract_strided_slice %6 {offsets = [0, 0], sizes = [8, 1], strides = [1, 1]} : vector<8x4xf32> to vector<8x1xf32>
    %18 = arith.mulf %16, %7 : vector<8x128xf32>
    %19 = vector.broadcast %17 : vector<8x1xf32> to vector<8x128xf32>
    %20 = arith.mulf %18, %19 : vector<8x128xf32>
    %21 = vector.extract_strided_slice %5 {offsets = [0, 128], sizes = [8, 128], strides = [1, 1]} : vector<8x512xf32> to vector<8x128xf32>
    %cst_9 = arith.constant dense<0xFF800000> : vector<8xf32>
    %22 = vector.multi_reduction <maximumf>, %21, %cst_9 [1] : vector<8x128xf32> to vector<8xf32>
    %23 = vector.shape_cast %22 : vector<8xf32> to vector<8x1xf32>
    %24 = vector.broadcast %23 : vector<8x1xf32> to vector<8x128xf32>
    %25 = arith.subf %21, %24 : vector<8x128xf32>
    %26 = math.exp %25 : vector<8x128xf32>
    %cst_10 = arith.constant dense<0.000000e+00> : vector<8xf32>
    %27 = vector.multi_reduction <add>, %26, %cst_10 [1] : vector<8x128xf32> to vector<8xf32>
    %28 = vector.shape_cast %27 : vector<8xf32> to vector<8x1xf32>
    %29 = vector.broadcast %28 : vector<8x1xf32> to vector<8x128xf32>
    %30 = arith.divf %26, %29 : vector<8x128xf32>
    %31 = vector.extract_strided_slice %6 {offsets = [0, 1], sizes = [8, 1], strides = [1, 1]} : vector<8x4xf32> to vector<8x1xf32>
    %32 = arith.mulf %30, %21 : vector<8x128xf32>
    %33 = vector.broadcast %31 : vector<8x1xf32> to vector<8x128xf32>
    %34 = arith.mulf %32, %33 : vector<8x128xf32>
    %35 = vector.extract_strided_slice %5 {offsets = [0, 256], sizes = [8, 128], strides = [1, 1]} : vector<8x512xf32> to vector<8x128xf32>
    %cst_11 = arith.constant dense<0xFF800000> : vector<8xf32>
    %36 = vector.multi_reduction <maximumf>, %35, %cst_11 [1] : vector<8x128xf32> to vector<8xf32>
    %37 = vector.shape_cast %36 : vector<8xf32> to vector<8x1xf32>
    %38 = vector.broadcast %37 : vector<8x1xf32> to vector<8x128xf32>
    %39 = arith.subf %35, %38 : vector<8x128xf32>
    %40 = math.exp %39 : vector<8x128xf32>
    %cst_12 = arith.constant dense<0.000000e+00> : vector<8xf32>
    %41 = vector.multi_reduction <add>, %40, %cst_12 [1] : vector<8x128xf32> to vector<8xf32>
    %42 = vector.shape_cast %41 : vector<8xf32> to vector<8x1xf32>
    %43 = vector.broadcast %42 : vector<8x1xf32> to vector<8x128xf32>
    %44 = arith.divf %40, %43 : vector<8x128xf32>
    %45 = vector.extract_strided_slice %6 {offsets = [0, 2], sizes = [8, 1], strides = [1, 1]} : vector<8x4xf32> to vector<8x1xf32>
    %46 = arith.mulf %44, %35 : vector<8x128xf32>
    %47 = vector.broadcast %45 : vector<8x1xf32> to vector<8x128xf32>
    %48 = arith.mulf %46, %47 : vector<8x128xf32>
    %49 = vector.extract_strided_slice %5 {offsets = [0, 384], sizes = [8, 128], strides = [1, 1]} : vector<8x512xf32> to vector<8x128xf32>
    %cst_13 = arith.constant dense<0xFF800000> : vector<8xf32>
    %50 = vector.multi_reduction <maximumf>, %49, %cst_13 [1] : vector<8x128xf32> to vector<8xf32>
    %51 = vector.shape_cast %50 : vector<8xf32> to vector<8x1xf32>
    %52 = vector.broadcast %51 : vector<8x1xf32> to vector<8x128xf32>
    %53 = arith.subf %49, %52 : vector<8x128xf32>
    %54 = math.exp %53 : vector<8x128xf32>
    %cst_14 = arith.constant dense<0.000000e+00> : vector<8xf32>
    %55 = vector.multi_reduction <add>, %54, %cst_14 [1] : vector<8x128xf32> to vector<8xf32>
    %56 = vector.shape_cast %55 : vector<8xf32> to vector<8x1xf32>
    %57 = vector.broadcast %56 : vector<8x1xf32> to vector<8x128xf32>
    %58 = arith.divf %54, %57 : vector<8x128xf32>
    %59 = vector.extract_strided_slice %6 {offsets = [0, 3], sizes = [8, 1], strides = [1, 1]} : vector<8x4xf32> to vector<8x1xf32>
    %60 = arith.mulf %58, %49 : vector<8x128xf32>
    %61 = vector.broadcast %59 : vector<8x1xf32> to vector<8x128xf32>
    %62 = arith.mulf %60, %61 : vector<8x128xf32>
    %63 = tpu.concatenate %20, %34, %48, %62 in 1 : vector<8x128xf32>, vector<8x128xf32>, vector<8x128xf32>, vector<8x128xf32> -> vector<8x512xf32>
    %c0_15 = arith.constant 0 : index
    %c0_16 = arith.constant 0 : index
    %64 = vector.load %arg4[%c0_15, %c0_16] : memref<512x128xf32, #tpu.memory_space<vmem>>, vector<512x128xf32>
    %cst_17 = arith.constant dense<0.000000e+00> : vector<8x128xf32>
    %65 = tpu.matmul %63, %64, %cst_17 {dimension_numbers = #tpu.dot_dimension_numbers<[1], [0], [0], [1], [0, 0, 1, 1], [], []>} : vector<8x512xf32>, vector<512x128xf32>, vector<8x128xf32> -> vector<8x128xf32>
    %c0_18 = arith.constant 0 : index
    %c0_19 = arith.constant 0 : index
    %66 = vector.load %arg6[%c0_18, %c0_19] : memref<8x128xf32, #tpu.memory_space<vmem>>, vector<8x128xf32>
    tpu.vector_store %arg6[%c0_18, %c0_19], %65 {strides = array<i32>} : memref<8x128xf32, #tpu.memory_space<vmem>>, vector<8x128xf32>,
    return
  }
  func.func @transform_0(%arg0: i32) -> (i32, i32) {
    %c0_i32 = arith.constant 0 : i32
    %c0_i32_0 = arith.constant 0 : i32
    return %arg0, %c0_i32 : i32, i32
  }
  func.func @transform_1(%arg0: i32) -> (i32, i32) {
    %c0_i32 = arith.constant 0 : i32
    %c0_i32_0 = arith.constant 0 : i32
    %c0_i32_1 = arith.constant 0 : i32
    return %c0_i32, %c0_i32_0 : i32, i32
  }
  func.func @transform_2(%arg0: i32) -> (i32, i32) {
    %c0_i32 = arith.constant 0 : i32
    %c0_i32_0 = arith.constant 0 : i32
    %c0_i32_1 = arith.constant 0 : i32
    return %c0_i32, %c0_i32_0 : i32, i32
  }
  func.func @transform_3(%arg0: i32) -> (i32, i32) {
    %c0_i32 = arith.constant 0 : i32
    %c0_i32_0 = arith.constant 0 : i32
    %c0_i32_1 = arith.constant 0 : i32
    return %c0_i32, %c0_i32_0 : i32, i32
  }
  func.func @transform_4(%arg0: i32) -> (i32, i32) {
    %c0_i32 = arith.constant 0 : i32
    %c0_i32_0 = arith.constant 0 : i32
    return %arg0, %c0_i32 : i32, i32
  }
  func.func @transform_5(%arg0: i32) -> (i32, i32) {
    %c0_i32 = arith.constant 0 : i32
    %c0_i32_0 = arith.constant 0 : i32
    return %arg0, %c0_i32 : i32, i32
  }
}

</mosaic_0001>

<llo_original>
// kernel: moe_layer_forward.1
$region0: #{moe_layer_forward.1}
  #allocation0 [shape = 'u32[]', space=smem, size = 0x4, offset = 0x4, fixed_abs, tag = 'smem constant byte address 0x4 - core index']
  #allocation1 [shape = 'u32[72,128]{1,0:T(1,128)}', space=vmem, size = 0x9000, scoped, tag = 'internal scratch']
  %s0 = inlined_call_operand.vmem [shape: f32[16,128], index: 0, kind: input, shape index: {}]
  %s1 = inlined_call_operand.vmem [shape: f32[128,512], index: 1, kind: input, shape index: {}]
  %s2 = inlined_call_operand.vmem [shape: f32[1,512], index: 2, kind: input, shape index: {}]
  %s3 = inlined_call_operand.vmem [shape: f32[512,128], index: 3, kind: input, shape index: {}]
  %s4 = inlined_call_operand.vmem [shape: f32[16,4], index: 4, kind: input, shape index: {}]
  %s5 = inlined_call_operand.vmem [shape: f32[16,128], index: 5, kind: output, shape index: {}]
  %s6 = sld [smem:[#allocation0]]
  $region53: #{moe_layer_forward.1} parent=0
    _
  %s8 = ssub.s32 1, %s6
  %s9 = scalar_select 0, %s8, %s6
  loop: start=0, step=1, limit=4
  $region2: #{moe_layer_forward.1} parent=0 // loop_pre_header
    _
  $region3: #{moe_layer_forward.1} parent=0 // loop_header
    %s11 = sphi 0, %s15
    %p12 = scmp.ge.s32.totalorder %s11, 4
    %s21 = sphi 0, %s23
    %s24 = sphi 0, %s21
    %s25 = sphi 0, %s24
    %s41 = sphi 0, %s25
    %s45 = sphi 0, %s45
    %s47 = sphi 0, %s45
    %s48 = sphi 0, %s47
    %s62 = sphi 0, %s48
    %s66 = sphi 0, %s66
    %s68 = sphi 0, %s66
    %s69 = sphi 0, %s68
    %s83 = sphi 0, %s69
    %s87 = sphi 0, %s87
    %s89 = sphi 0, %s87
    %s90 = sphi 0, %s89
    %s104 = sphi 0, %s90
    %s110 = sphi 0, %s112
    %s113 = sphi 0, %s110
    %s114 = sphi 0, %s113
    %s130 = sphi 0, %s114
    %s136 = sphi 0, %s138
    %s139 = sphi 0, %s136
    %s140 = sphi 0, %s139
    %s156 = sphi 0, %s140
  $region4: #{moe_layer_forward.1} parent=0 // loop_header_branch
    %14 = sbr.rel (%p12) target = $region8
  $region5: #{moe_layer_forward.1} parent=0 // loop_body
    %s16 = ssub.s32 %s11, 1
    %s17 = ssub.s32 %s11, 2
    %s18 = sadd.s32 %s11, 1
    %s19 = ssub.s32 %s11, %s18
    %p20 = scmp.eq.s32.totalorder %s19, 0
    %s22 = sadd.s32 %s21, 1
    %s23 = scalar_select %p20, %s21, %s22
    %p26 = pneg %p20
    %p27 = scmp.eq.s32.totalorder %s11, 1
    %p28 = por %p26, %p27
    %p29 = scmp.ne.s32.totalorder %s21, %s24
    %p30 = scmp.eq.s32.totalorder %s11, 0
    %p31 = por %p29, %p30
    %p32 = scmp.ne.s32.totalorder %s21, %s24
    %p33 = scmp.eq.s32.totalorder %s16, 1
    %p34 = por %p32, %p33
    %p35 = scmp.ne.s32.totalorder %s24, %s25
    %p36 = scmp.eq.s32.totalorder %s16, 0
    %p37 = por %p35, %p36
    %p38 = scmp.ne.s32.totalorder %s24, %s25
    %p39 = scmp.eq.s32.totalorder %s17, 1
    %p40 = por %p38, %p39
    %p42 = scmp.ne.s32.totalorder %s25, %s41
    %p43 = scmp.eq.s32.totalorder %s17, 0
    %p44 = por %p42, %p43
    %s46 = sadd.s32 %s45, 1
    %p49 = scmp.eq.s32.totalorder %s11, 1
    %p50 = scmp.ne.s32.totalorder %s45, %s47
    %p51 = scmp.eq.s32.totalorder %s11, 0
    %p52 = por %p50, %p51
    %p53 = scmp.ne.s32.totalorder %s45, %s47
    %p54 = scmp.eq.s32.totalorder %s16, 1
    %p55 = por %p53, %p54
    %p56 = scmp.ne.s32.totalorder %s47, %s48
    %p57 = scmp.eq.s32.totalorder %s16, 0
    %p58 = por %p56, %p57
    %p59 = scmp.ne.s32.totalorder %s47, %s48
    %p60 = scmp.eq.s32.totalorder %s17, 1
    %p61 = por %p59, %p60
    %p63 = scmp.ne.s32.totalorder %s48, %s62
    %p64 = scmp.eq.s32.totalorder %s17, 0
    %p65 = por %p63, %p64
    %s67 = sadd.s32 %s66, 1
    %p70 = scmp.eq.s32.totalorder %s11, 1
    %p71 = scmp.ne.s32.totalorder %s66, %s68
    %p72 = scmp.eq.s32.totalorder %s11, 0
    %p73 = por %p71, %p72
    %p74 = scmp.ne.s32.totalorder %s66, %s68
    %p75 = scmp.eq.s32.totalorder %s16, 1
    %p76 = por %p74, %p75
    %p77 = scmp.ne.s32.totalorder %s68, %s69
    %p78 = scmp.eq.s32.totalorder %s16, 0
    %p79 = por %p77, %p78
    %p80 = scmp.ne.s32.totalorder %s68, %s69
    %p81 = scmp.eq.s32.totalorder %s17, 1
    %p82 = por %p80, %p81
    %p84 = scmp.ne.s32.totalorder %s69, %s83
    %p85 = scmp.eq.s32.totalorder %s17, 0
    %p86 = por %p84, %p85
    %s88 = sadd.s32 %s87, 1
    %p91 = scmp.eq.s32.totalorder %s11, 1
    %p92 = scmp.ne.s32.totalorder %s87, %s89
    %p93 = scmp.eq.s32.totalorder %s11, 0
    %p94 = por %p92, %p93
    %p95 = scmp.ne.s32.totalorder %s87, %s89
    %p96 = scmp.eq.s32.totalorder %s16, 1
    %p97 = por %p95, %p96
    %p98 = scmp.ne.s32.totalorder %s89, %s90
    %p99 = scmp.eq.s32.totalorder %s16, 0
    %p100 = por %p98, %p99
    %p101 = scmp.ne.s32.totalorder %s89, %s90
    %p102 = scmp.eq.s32.totalorder %s17, 1
    %p103 = por %p101, %p102
    %p105 = scmp.ne.s32.totalorder %s90, %s104
    %p106 = scmp.eq.s32.totalorder %s17, 0
    %p107 = por %p105, %p106
    %s108 = ssub.s32 %s11, %s18
    %p109 = scmp.eq.s32.totalorder %s108, 0
    %s111 = sadd.s32 %s110, 1
    %s112 = scalar_select %p109, %s110, %s111
    %p115 = pneg %p109
    %p116 = scmp.eq.s32.totalorder %s11, 1
    %p117 = por %p115, %p116
    %p118 = scmp.ne.s32.totalorder %s110, %s113
    %p119 = scmp.eq.s32.totalorder %s11, 0
    %p120 = por %p118, %p119
    %p121 = scmp.ne.s32.totalorder %s110, %s113
    %p122 = scmp.eq.s32.totalorder %s16, 1
    %p123 = por %p121, %p122
    %p124 = scmp.ne.s32.totalorder %s113, %s114
    %p125 = scmp.eq.s32.totalorder %s16, 0
    %p126 = por %p124, %p125
    %p127 = scmp.ne.s32.totalorder %s113, %s114
    %p128 = scmp.eq.s32.totalorder %s17, 1
    %p129 = por %p127, %p128
    %p131 = scmp.ne.s32.totalorder %s114, %s130
    %p132 = scmp.eq.s32.totalorder %s17, 0
    %p133 = por %p131, %p132
    %s134 = ssub.s32 %s11, %s18
    %p135 = scmp.eq.s32.totalorder %s134, 0
    %s137 = sadd.s32 %s136, 1
    %s138 = scalar_select %p135, %s136, %s137
    %p141 = pneg %p135
    %p142 = scmp.eq.s32.totalorder %s11, 1
    %p143 = por %p141, %p142
    %p144 = scmp.ne.s32.totalorder %s136, %s139
    %p145 = scmp.eq.s32.totalorder %s11, 0
    %p146 = por %p144, %p145
    %p147 = scmp.ne.s32.totalorder %s136, %s139
    %p148 = scmp.eq.s32.totalorder %s16, 1
    %p149 = por %p147, %p148
    %p150 = scmp.ne.s32.totalorder %s139, %s140
    %p151 = scmp.eq.s32.totalorder %s16, 0
    %p152 = por %p150, %p151
    %p153 = scmp.ne.s32.totalorder %s139, %s140
    %p154 = scmp.eq.s32.totalorder %s17, 1
    %p155 = por %p153, %p154
    %p157 = scmp.ne.s32.totalorder %s140, %s156
    %p158 = scmp.eq.s32.totalorder %s17, 0
    %p159 = por %p157, %p158
    %p160 = scmp.le.s32.totalorder 1, %s11
    %p161 = scmp.lt.s32.totalorder %s11, 3
    %p162 = pnand %p160, %p161
    %p163 = pneg %p162
    // Predicated region
    $region9: #{moe_layer_forward.1} parent=5 // pred_check
      _
    $region10: #{moe_layer_forward.1} parent=5 // pred_check_branch
      %165 = sbr.rel (%p162) target = $region12
    $region11: #{moe_layer_forward.1} parent=5 // pred_region
      %s166 = ssub.s32 %s11, 1
      // Predicated region
      $region13: #{moe_layer_forward.1} parent=11 // pred_check
        %p167 = pneg %p58
      $region14: #{moe_layer_forward.1} parent=11 // pred_check_branch
        %169 = sbr.rel (%p167) target = $region16
      $region15: #{moe_layer_forward.1} parent=11 // pred_region
        _
      $region16: #{moe_layer_forward.1} parent=11 // pred_fallthru
        _
      // Predicated region
      $region17: #{moe_layer_forward.1} parent=11 // pred_check
        %p170 = pneg %p79
      $region18: #{moe_layer_forward.1} parent=11 // pred_check_branch
        %172 = sbr.rel (%p170) target = $region20
      $region19: #{moe_layer_forward.1} parent=11 // pred_region
        _
      $region20: #{moe_layer_forward.1} parent=11 // pred_fallthru
        _
      // Predicated region
      $region21: #{moe_layer_forward.1} parent=11 // pred_check
        %p173 = pneg %p100
      $region22: #{moe_layer_forward.1} parent=11 // pred_check_branch
        %175 = sbr.rel (%p173) target = $region24
      $region23: #{moe_layer_forward.1} parent=11 // pred_region
        _
      $region24: #{moe_layer_forward.1} parent=11 // pred_fallthru
        _
    $region12: #{moe_layer_forward.1} parent=5 // pred_fallthru
      _
    %p176 = scmp.lt.s32.totalorder %s11, 2
    // Predicated region
    $region25: #{moe_layer_forward.1} parent=5 // pred_check
      %p177 = pneg %p176
    $region26: #{moe_layer_forward.1} parent=5 // pred_check_branch
      %179 = sbr.rel (%p177) target = $region28
    $region27: #{moe_layer_forward.1} parent=5 // pred_region
      // Predicated region
      $region29: #{moe_layer_forward.1} parent=27 // pred_check
        %p180 = pneg %p31
      $region30: #{moe_layer_forward.1} parent=27 // pred_check_branch
        %182 = sbr.rel (%p180) target = $region32
      $region31: #{moe_layer_forward.1} parent=27 // pred_region
        %p183 = scmp.lt.s32.totalorder %s11, 1
        %s184 = scalar_select %p183, %s11, 1
        %s185 = smul.addr %s184, 8
        %s186 = scalar_lea.vmem %s0, %s185
      $region32: #{moe_layer_forward.1} parent=27 // pred_fallthru
        _
      // Predicated region
      $region33: #{moe_layer_forward.1} parent=27 // pred_check
        %p187 = pneg %p120
      $region34: #{moe_layer_forward.1} parent=27 // pred_check_branch
        %189 = sbr.rel (%p187) target = $region36
      $region35: #{moe_layer_forward.1} parent=27 // pred_region
        %p190 = scmp.lt.s32.totalorder %s11, 1
        %s191 = scalar_select %p190, %s11, 1
        %s192 = smul.addr %s191, 8
        %s193 = scalar_lea.vmem %s4, %s192
      $region36: #{moe_layer_forward.1} parent=27 // pred_fallthru
        _
    $region28: #{moe_layer_forward.1} parent=5 // pred_fallthru
      _
    %p194 = scmp.le.s32.totalorder 1, %s11
    %p195 = scmp.lt.s32.totalorder %s11, 3
    %p196 = pnand %p194, %p195
    %p197 = pneg %p196
    // Predicated region
    $region37: #{moe_layer_forward.1} parent=5 // pred_check
      _
    $region38: #{moe_layer_forward.1} parent=5 // pred_check_branch
      %199 = sbr.rel (%p196) target = $region40
    $region39: #{moe_layer_forward.1} parent=5 // pred_region
      %s200 = ssub.s32 %s11, 1
      %p201 = scmp.lt.s32.totalorder %s16, 1
      %s202 = scalar_select %p201, %s16, 1
      %s203 = smul.addr %s202, 8
      %s204 = scalar_lea.vmem %s0, %s203
      %p205 = pneg %p37
      %p206 = pneg %p34
      %p207 = pneg %p58
      %p208 = pneg %p55
      %p209 = pneg %p79
      %p210 = pneg %p76
      %p211 = pneg %p100
      %p212 = pneg %p97
      %p213 = scmp.lt.s32.totalorder %s16, 1
      %s214 = scalar_select %p213, %s16, 1
      %s215 = smul.addr %s214, 8
      %s216 = scalar_lea.vmem %s4, %s215
      %p217 = pneg %p126
      %p218 = pneg %p123
      %p219 = pneg %p152
      %p220 = pneg %p149
      %p221 = scmp.lt.s32.totalorder %s16, 1
      %s222 = scalar_select %p221, %s16, 1
      %s223 = smul.addr %s222, 8
      %s224 = scalar_lea.vmem %s5, %s223
      %p225 = scmp.lt.s32.totalorder %s16, 1
      %s226 = scalar_select %p225, %s16, 1
      %s227 = smul.addr %s226, 8
      %s228 = scalar_lea.vmem %s0, %s227
      %p229 = scmp.lt.s32.totalorder %s16, 1
      %s230 = scalar_select %p229, %s16, 1
      %s231 = smul.addr %s230, 8
      %s232 = scalar_lea.vmem %s4, %s231
      %p233 = scmp.lt.s32.totalorder %s16, 1
      %s234 = scalar_select %p233, %s16, 1
      %s235 = smul.addr %s234, 8
      %s236 = scalar_lea.vmem %s5, %s235
      %v237 = vld [vmem:[%s228] sm:$0xff]
      %v238 = vld [vmem:[%s1] sm:$0xff]
      %v239 = vld [vmem:[%s1 + $0x8] sm:$0xff]
      %v240 = vld [vmem:[%s1 + $0x10] sm:$0xff]
      %v241 = vld [vmem:[%s1 + $0x18] sm:$0xff]
      %v242 = vld [vmem:[%s1 + $0x20] sm:$0xff]
      %v243 = vld [vmem:[%s1 + $0x28] sm:$0xff]
      %v244 = vld [vmem:[%s1 + $0x30] sm:$0xff]
      %v245 = vld [vmem:[%s1 + $0x38] sm:$0xff]
      %v246 = vld [vmem:[%s1 + $0x40] sm:$0xff]
      %v247 = vld [vmem:[%s1 + $0x48] sm:$0xff]
      %v248 = vld [vmem:[%s1 + $0x50] sm:$0xff]
      %v249 = vld [vmem:[%s1 + $0x58] sm:$0xff]
      %v250 = vld [vmem:[%s1 + $0x60] sm:$0xff]
      %v251 = vld [vmem:[%s1 + $0x68] sm:$0xff]
      %v252 = vld [vmem:[%s1 + $0x70] sm:$0xff]
      %v253 = vld [vmem:[%s1 + $0x78] sm:$0xff]
      %v254 = vld [vmem:[%s1 + $0x80] sm:$0xff]
      %v255 = vld [vmem:[%s1 + $0x88] sm:$0xff]
      %v256 = vld [vmem:[%s1 + $0x90] sm:$0xff]
      %v257 = vld [vmem:[%s1 + $0x98] sm:$0xff]
      %v258 = vld [vmem:[%s1 + $0xa0] sm:$0xff]
      %v259 = vld [vmem:[%s1 + $0xa8] sm:$0xff]
      %v260 = vld [vmem:[%s1 + $0xb0] sm:$0xff]
      %v261 = vld [vmem:[%s1 + $0xb8] sm:$0xff]
      %v262 = vld [vmem:[%s1 + $0xc0] sm:$0xff]
      %v263 = vld [vmem:[%s1 + $0xc8] sm:$0xff]
      %v264 = vld [vmem:[%s1 + $0xd0] sm:$0xff]
      %v265 = vld [vmem:[%s1 + $0xd8] sm:$0xff]
      %v266 = vld [vmem:[%s1 + $0xe0] sm:$0xff]
      %v267 = vld [vmem:[%s1 + $0xe8] sm:$0xff]
      %v268 = vld [vmem:[%s1 + $0xf0] sm:$0xff]
      %v269 = vld [vmem:[%s1 + $0xf8] sm:$0xff]
      %v270 = vld [vmem:[%s1 + $0x100] sm:$0xff]
      %v271 = vld [vmem:[%s1 + $0x108] sm:$0xff]
      %v272 = vld [vmem:[%s1 + $0x110] sm:$0xff]
      %v273 = vld [vmem:[%s1 + $0x118] sm:$0xff]
      %v274 = vld [vmem:[%s1 + $0x120] sm:$0xff]
      %v275 = vld [vmem:[%s1 + $0x128] sm:$0xff]
      %v276 = vld [vmem:[%s1 + $0x130] sm:$0xff]
      %v277 = vld [vmem:[%s1 + $0x138] sm:$0xff]
      %v278 = vld [vmem:[%s1 + $0x140] sm:$0xff]
      %v279 = vld [vmem:[%s1 + $0x148] sm:$0xff]
      %v280 = vld [vmem:[%s1 + $0x150] sm:$0xff]
      %v281 = vld [vmem:[%s1 + $0x158] sm:$0xff]
      %v282 = vld [vmem:[%s1 + $0x160] sm:$0xff]
      %v283 = vld [vmem:[%s1 + $0x168] sm:$0xff]
      %v284 = vld [vmem:[%s1 + $0x170] sm:$0xff]
      %v285 = vld [vmem:[%s1 + $0x178] sm:$0xff]
      %v286 = vld [vmem:[%s1 + $0x180] sm:$0xff]
      %v287 = vld [vmem:[%s1 + $0x188] sm:$0xff]
      %v288 = vld [vmem:[%s1 + $0x190] sm:$0xff]
      %v289 = vld [vmem:[%s1 + $0x198] sm:$0xff]
      %v290 = vld [vmem:[%s1 + $0x1a0] sm:$0xff]
      %v291 = vld [vmem:[%s1 + $0x1a8] sm:$0xff]
      %v292 = vld [vmem:[%s1 + $0x1b0] sm:$0xff]
      %v293 = vld [vmem:[%s1 + $0x1b8] sm:$0xff]
      %v294 = vld [vmem:[%s1 + $0x1c0] sm:$0xff]
      %v295 = vld [vmem:[%s1 + $0x1c8] sm:$0xff]
      %v296 = vld [vmem:[%s1 + $0x1d0] sm:$0xff]
      %v297 = vld [vmem:[%s1 + $0x1d8] sm:$0xff]
      %v298 = vld [vmem:[%s1 + $0x1e0] sm:$0xff]
      %v299 = vld [vmem:[%s1 + $0x1e8] sm:$0xff]
      %v300 = vld [vmem:[%s1 + $0x1f0] sm:$0xff]
      %v301 = vld [vmem:[%s1 + $0x1f8] sm:$0xff]
      %v302 = vld [vmem:[%s2] sm:$0xf]
      %v304 = vperm.slane %v302, 0
      %v305 = vperm.slane %v302, 1
      %v306 = vperm.slane %v302, 2
      %v307 = vperm.slane %v302, 3
      %312 = vmatpush.msra.mxu0 %v298
      %313 = vmatpush.msra.mxu0 %v294
      %314 = vmatpush.msra.mxu0 %v290
      %315 = vmatpush.msra.mxu0 %v286
      %316 = vmatpush.msra.mxu0 %v282
      %317 = vmatpush.msra.mxu0 %v278
      %318 = vmatpush.msra.mxu0 %v274
      %319 = vmatpush.msra.mxu0 %v270
      %320 = vmatpush.msra.mxu0 %v266
      %321 = vmatpush.msra.mxu0 %v262
      %322 = vmatpush.msra.mxu0 %v258
      %323 = vmatpush.msra.mxu0 %v254
      %324 = vmatpush.msra.mxu0 %v250
      %325 = vmatpush.msra.mxu0 %v246
      %326 = vmatpush.msra.mxu0 %v242
      %327 = vmatpush.msra.mxu0 %v238
      %328 = vmatmul.f32.gmra.mxu0 %v237
      %v329 = vpop.f32.mrf.mxu0
      %v330 = vadd.f32 %v304, %v329
      %331 = vdwg.mxu0
      %332 = vmatpush.msra.mxu0 %v299
      %333 = vmatpush.msra.mxu0 %v295
      %334 = vmatpush.msra.mxu0 %v291
      %335 = vmatpush.msra.mxu0 %v287
      %336 = vmatpush.msra.mxu0 %v283
      %337 = vmatpush.msra.mxu0 %v279
      %338 = vmatpush.msra.mxu0 %v275
      %339 = vmatpush.msra.mxu0 %v271
      %340 = vmatpush.msra.mxu0 %v267
      %341 = vmatpush.msra.mxu0 %v263
      %342 = vmatpush.msra.mxu0 %v259
      %343 = vmatpush.msra.mxu0 %v255
      %344 = vmatpush.msra.mxu0 %v251
      %345 = vmatpush.msra.mxu0 %v247
      %346 = vmatpush.msra.mxu0 %v243
      %347 = vmatpush.msra.mxu0 %v239
      %348 = vmatmul.f32.gmra.mxu0 %v237
      %v349 = vpop.f32.mrf.mxu0
      %v350 = vadd.f32 %v305, %v349
      %351 = vdwg.mxu0
      %352 = vmatpush.msra.mxu0 %v300
      %353 = vmatpush.msra.mxu0 %v296
      %354 = vmatpush.msra.mxu0 %v292
      %355 = vmatpush.msra.mxu0 %v288
      %356 = vmatpush.msra.mxu0 %v284
      %357 = vmatpush.msra.mxu0 %v280
      %358 = vmatpush.msra.mxu0 %v276
      %359 = vmatpush.msra.mxu0 %v272
      %360 = vmatpush.msra.mxu0 %v268
      %361 = vmatpush.msra.mxu0 %v264
      %362 = vmatpush.msra.mxu0 %v260
      %363 = vmatpush.msra.mxu0 %v256
      %364 = vmatpush.msra.mxu0 %v252
      %365 = vmatpush.msra.mxu0 %v248
      %366 = vmatpush.msra.mxu0 %v244
      %367 = vmatpush.msra.mxu0 %v240
      %368 = vmatmul.f32.gmra.mxu0 %v237
      %v369 = vpop.f32.mrf.mxu0
      %v370 = vadd.f32 %v306, %v369
      %371 = vdwg.mxu0
      %372 = vmatpush.msra.mxu0 %v301
      %373 = vmatpush.msra.mxu0 %v297
      %374 = vmatpush.msra.mxu0 %v293
      %375 = vmatpush.msra.mxu0 %v289
      %376 = vmatpush.msra.mxu0 %v285
      %377 = vmatpush.msra.mxu0 %v281
      %378 = vmatpush.msra.mxu0 %v277
      %379 = vmatpush.msra.mxu0 %v273
      %380 = vmatpush.msra.mxu0 %v269
      %381 = vmatpush.msra.mxu0 %v265
      %382 = vmatpush.msra.mxu0 %v261
      %383 = vmatpush.msra.mxu0 %v257
      %384 = vmatpush.msra.mxu0 %v253
      %385 = vmatpush.msra.mxu0 %v249
      %386 = vmatpush.msra.mxu0 %v245
      %387 = vmatpush.msra.mxu0 %v241
      %388 = vmatmul.f32.gmra.mxu0 %v237
      %v389 = vpop.f32.mrf.mxu0
      %v390 = vadd.f32 %v307, %v389
      %391 = vdwg.mxu0
      %v392 = vld [vmem:[%s232] sm:$0xff]
      %393 = vmax.xlane.f32.xlu0 %v330
      %v394 = vpop.xlane.xlu0 %393
      %v395 = vsub.f32 %v330, %v394
      %v396 = vmul.f32 %v395, 1.442695
      %v397 = vpow.pop %v396
      %398 = vadd.xlane.f32.xlu0 %v397
      %v399 = vpop.xlane.xlu0 %398
      %v400 = vrcp.pop %v399
      %v401 = vmul.f32 %v399, %v400
      %v402 = vsub.f32 1.0, %v401
      %v403 = vmul.f32 %v400, %v402
      %v404 = vadd.f32 %v400, %v403
      %vm405 = vweird.f32 %v399
      %vm406 = vweird.f32 %v400
      %vm407 = vmor %vm405, %vm406
      %v408 = vsel %vm407, %v400, %v404
      %v409 = vand.u32 2147483647, %v399
      %vm410 = vcmp.eq.f32.partialorder %v409, 8.507059e+37
      %v411 = vand.u32 %v399, 2147483648
      %v412 = vor.u32 1.1754944e-38, %v411
      %v413 = vsel %vm410, %v412, %v408
      %v414 = vmul.f32 %v397, %v413
      %v415 = vmul.f32 %v414, %v330
      %417 = vset.pattern.permute.xlu0 0
      %418 = vperm.xlu0 %417, %v392
      %v419 = vpop.permute.xlu0 %418
      %v421 = vmul.f32 %v415, %v419
      %422 = vmax.xlane.f32.xlu0 %v350
      %v423 = vpop.xlane.xlu0 %422
      %v424 = vsub.f32 %v350, %v423
      %v425 = vmul.f32 %v424, 1.442695
      %v426 = vpow.pop %v425
      %427 = vadd.xlane.f32.xlu0 %v426
      %v428 = vpop.xlane.xlu0 %427
      %v429 = vrcp.pop %v428
      %v430 = vmul.f32 %v428, %v429
      %v431 = vsub.f32 1.0, %v430
      %v432 = vmul.f32 %v429, %v431
      %v433 = vadd.f32 %v429, %v432
      %vm434 = vweird.f32 %v428
      %vm435 = vweird.f32 %v429
      %vm436 = vmor %vm434, %vm435
      %v437 = vsel %vm436, %v429, %v433
      %v438 = vand.u32 2147483647, %v428
      %vm439 = vcmp.eq.f32.partialorder %v438, 8.507059e+37
      %v440 = vand.u32 %v428, 2147483648
      %v441 = vor.u32 1.1754944e-38, %v440
      %v442 = vsel %vm439, %v441, %v437
      %v443 = vmul.f32 %v426, %v442
      %v444 = vmul.f32 %v443, %v350
      %445 = vset.pattern.permute.xlu0 1
      %446 = vperm.xlu0 %445, %v392
      %v447 = vpop.permute.xlu0 %446
      %v449 = vmul.f32 %v444, %v447
      %450 = vmax.xlane.f32.xlu0 %v370
      %v451 = vpop.xlane.xlu0 %450
      %v452 = vsub.f32 %v370, %v451
      %v453 = vmul.f32 %v452, 1.442695
      %v454 = vpow.pop %v453
      %455 = vadd.xlane.f32.xlu0 %v454
      %v456 = vpop.xlane.xlu0 %455
      %v457 = vrcp.pop %v456
      %v458 = vmul.f32 %v456, %v457
      %v459 = vsub.f32 1.0, %v458
      %v460 = vmul.f32 %v457, %v459
      %v461 = vadd.f32 %v457, %v460
      %vm462 = vweird.f32 %v456
      %vm463 = vweird.f32 %v457
      %vm464 = vmor %vm462, %vm463
      %v465 = vsel %vm464, %v457, %v461
      %v466 = vand.u32 2147483647, %v456
      %vm467 = vcmp.eq.f32.partialorder %v466, 8.507059e+37
      %v468 = vand.u32 %v456, 2147483648
      %v469 = vor.u32 1.1754944e-38, %v468
      %v470 = vsel %vm467, %v469, %v465
      %v471 = vmul.f32 %v454, %v470
      %v472 = vmul.f32 %v471, %v370
      %473 = vset.pattern.permute.xlu0 2
      %474 = vperm.xlu0 %473, %v392
      %v475 = vpop.permute.xlu0 %474
      %v477 = vmul.f32 %v472, %v475
      %478 = vmax.xlane.f32.xlu0 %v390
      %v479 = vpop.xlane.xlu0 %478
      %v480 = vsub.f32 %v390, %v479
      %v481 = vmul.f32 %v480, 1.442695
      %v482 = vpow.pop %v481
      %483 = vadd.xlane.f32.xlu0 %v482
      %v484 = vpop.xlane.xlu0 %483
      %v485 = vrcp.pop %v484
      %v486 = vmul.f32 %v484, %v485
      %v487 = vsub.f32 1.0, %v486
      %v488 = vmul.f32 %v485, %v487
      %v489 = vadd.f32 %v485, %v488
      %vm490 = vweird.f32 %v484
      %vm491 = vweird.f32 %v485
      %vm492 = vmor %vm490, %vm491
      %v493 = vsel %vm492, %v485, %v489
      %v494 = vand.u32 2147483647, %v484
      %vm495 = vcmp.eq.f32.partialorder %v494, 8.507059e+37
      %v496 = vand.u32 %v484, 2147483648
      %v497 = vor.u32 1.1754944e-38, %v496
      %v498 = vsel %vm495, %v497, %v493
      %v499 = vmul.f32 %v482, %v498
      %v500 = vmul.f32 %v499, %v390
      %501 = vset.pattern.permute.xlu0 3
      %502 = vperm.xlu0 %501, %v392
      %v503 = vpop.permute.xlu0 %502
      %v505 = vmul.f32 %v500, %v503
      %v506 = vld [vmem:[%s3] sm:$0xff]
      %v507 = vld [vmem:[%s3 + $0x8] sm:$0xff]
      %v508 = vld [vmem:[%s3 + $0x10] sm:$0xff]
      %v509 = vld [vmem:[%s3 + $0x18] sm:$0xff]
      %v510 = vld [vmem:[%s3 + $0x20] sm:$0xff]
      %v511 = vld [vmem:[%s3 + $0x28] sm:$0xff]
      %v512 = vld [vmem:[%s3 + $0x30] sm:$0xff]
      %v513 = vld [vmem:[%s3 + $0x38] sm:$0xff]
      %v514 = vld [vmem:[%s3 + $0x40] sm:$0xff]
      %v515 = vld [vmem:[%s3 + $0x48] sm:$0xff]
      %v516 = vld [vmem:[%s3 + $0x50] sm:$0xff]
      %v517 = vld [vmem:[%s3 + $0x58] sm:$0xff]
      %v518 = vld [vmem:[%s3 + $0x60] sm:$0xff]
      %v519 = vld [vmem:[%s3 + $0x68] sm:$0xff]
      %v520 = vld [vmem:[%s3 + $0x70] sm:$0xff]
      %v521 = vld [vmem:[%s3 + $0x78] sm:$0xff]
      %v522 = vld [vmem:[%s3 + $0x80] sm:$0xff]
      %v523 = vld [vmem:[%s3 + $0x88] sm:$0xff]
      %v524 = vld [vmem:[%s3 + $0x90] sm:$0xff]
      %v525 = vld [vmem:[%s3 + $0x98] sm:$0xff]
      %v526 = vld [vmem:[%s3 + $0xa0] sm:$0xff]
      %v527 = vld [vmem:[%s3 + $0xa8] sm:$0xff]
      %v528 = vld [vmem:[%s3 + $0xb0] sm:$0xff]
      %v529 = vld [vmem:[%s3 + $0xb8] sm:$0xff]
      %v530 = vld [vmem:[%s3 + $0xc0] sm:$0xff]
      %v531 = vld [vmem:[%s3 + $0xc8] sm:$0xff]
      %v532 = vld [vmem:[%s3 + $0xd0] sm:$0xff]
      %v533 = vld [vmem:[%s3 + $0xd8] sm:$0xff]
      %v534 = vld [vmem:[%s3 + $0xe0] sm:$0xff]
      %v535 = vld [vmem:[%s3 + $0xe8] sm:$0xff]
      %v536 = vld [vmem:[%s3 + $0xf0] sm:$0xff]
      %v537 = vld [vmem:[%s3 + $0xf8] sm:$0xff]
      %v538 = vld [vmem:[%s3 + $0x100] sm:$0xff]
      %v539 = vld [vmem:[%s3 + $0x108] sm:$0xff]
      %v540 = vld [vmem:[%s3 + $0x110] sm:$0xff]
      %v541 = vld [vmem:[%s3 + $0x118] sm:$0xff]
      %v542 = vld [vmem:[%s3 + $0x120] sm:$0xff]
      %v543 = vld [vmem:[%s3 + $0x128] sm:$0xff]
      %v544 = vld [vmem:[%s3 + $0x130] sm:$0xff]
      %v545 = vld [vmem:[%s3 + $0x138] sm:$0xff]
      %v546 = vld [vmem:[%s3 + $0x140] sm:$0xff]
      %v547 = vld [vmem:[%s3 + $0x148] sm:$0xff]
      %v548 = vld [vmem:[%s3 + $0x150] sm:$0xff]
      %v549 = vld [vmem:[%s3 + $0x158] sm:$0xff]
      %v550 = vld [vmem:[%s3 + $0x160] sm:$0xff]
      %v551 = vld [vmem:[%s3 + $0x168] sm:$0xff]
      %v552 = vld [vmem:[%s3 + $0x170] sm:$0xff]
      %v553 = vld [vmem:[%s3 + $0x178] sm:$0xff]
      %v554 = vld [vmem:[%s3 + $0x180] sm:$0xff]
      %v555 = vld [vmem:[%s3 + $0x188] sm:$0xff]
      %v556 = vld [vmem:[%s3 + $0x190] sm:$0xff]
      %v557 = vld [vmem:[%s3 + $0x198] sm:$0xff]
      %v558 = vld [vmem:[%s3 + $0x1a0] sm:$0xff]
      %v559 = vld [vmem:[%s3 + $0x1a8] sm:$0xff]
      %v560 = vld [vmem:[%s3 + $0x1b0] sm:$0xff]
      %v561 = vld [vmem:[%s3 + $0x1b8] sm:$0xff]
      %v562 = vld [vmem:[%s3 + $0x1c0] sm:$0xff]
      %v563 = vld [vmem:[%s3 + $0x1c8] sm:$0xff]
      %v564 = vld [vmem:[%s3 + $0x1d0] sm:$0xff]
      %v565 = vld [vmem:[%s3 + $0x1d8] sm:$0xff]
      %v566 = vld [vmem:[%s3 + $0x1e0] sm:$0xff]
      %v567 = vld [vmem:[%s3 + $0x1e8] sm:$0xff]
      %v568 = vld [vmem:[%s3 + $0x1f0] sm:$0xff]
      %v569 = vld [vmem:[%s3 + $0x1f8] sm:$0xff]
      %570 = vmatpush.msra.mxu0 %v521
      %571 = vmatpush.msra.mxu0 %v520
      %572 = vmatpush.msra.mxu0 %v519
      %573 = vmatpush.msra.mxu0 %v518
      %574 = vmatpush.msra.mxu0 %v517
      %575 = vmatpush.msra.mxu0 %v516
      %576 = vmatpush.msra.mxu0 %v515
      %577 = vmatpush.msra.mxu0 %v514
      %578 = vmatpush.msra.mxu0 %v513
      %579 = vmatpush.msra.mxu0 %v512
      %580 = vmatpush.msra.mxu0 %v511
      %581 = vmatpush.msra.mxu0 %v510
      %582 = vmatpush.msra.mxu0 %v509
      %583 = vmatpush.msra.mxu0 %v508
      %584 = vmatpush.msra.mxu0 %v507
      %585 = vmatpush.msra.mxu0 %v506
      %586 = vmatmul.f32.gmra.mxu0 %v421
      %v587 = vpop.f32.mrf.mxu0
      %v588 = vadd.f32 0.0, %v587
      %589 = vdwg.mxu0
      %590 = vmatpush.msra.mxu0 %v537
      %591 = vmatpush.msra.mxu0 %v536
      %592 = vmatpush.msra.mxu0 %v535
      %593 = vmatpush.msra.mxu0 %v534
      %594 = vmatpush.msra.mxu0 %v533
      %595 = vmatpush.msra.mxu0 %v532
      %596 = vmatpush.msra.mxu0 %v531
      %597 = vmatpush.msra.mxu0 %v530
      %598 = vmatpush.msra.mxu0 %v529
      %599 = vmatpush.msra.mxu0 %v528
      %600 = vmatpush.msra.mxu0 %v527
      %601 = vmatpush.msra.mxu0 %v526
      %602 = vmatpush.msra.mxu0 %v525
      %603 = vmatpush.msra.mxu0 %v524
      %604 = vmatpush.msra.mxu0 %v523
      %605 = vmatpush.msra.mxu0 %v522
      %606 = vmatmul.f32.gmra.mxu0 %v449
      %v607 = vpop.f32.mrf.mxu0
      %v608 = vadd.f32 %v588, %v607
      %609 = vdwg.mxu0
      %610 = vmatpush.msra.mxu0 %v553
      %611 = vmatpush.msra.mxu0 %v552
      %612 = vmatpush.msra.mxu0 %v551
      %613 = vmatpush.msra.mxu0 %v550
      %614 = vmatpush.msra.mxu0 %v549
      %615 = vmatpush.msra.mxu0 %v548
      %616 = vmatpush.msra.mxu0 %v547
      %617 = vmatpush.msra.mxu0 %v546
      %618 = vmatpush.msra.mxu0 %v545
      %619 = vmatpush.msra.mxu0 %v544
      %620 = vmatpush.msra.mxu0 %v543
      %621 = vmatpush.msra.mxu0 %v542
      %622 = vmatpush.msra.mxu0 %v541
      %623 = vmatpush.msra.mxu0 %v540
      %624 = vmatpush.msra.mxu0 %v539
      %625 = vmatpush.msra.mxu0 %v538
      %626 = vmatmul.f32.gmra.mxu0 %v477
      %v627 = vpop.f32.mrf.mxu0
      %v628 = vadd.f32 %v608, %v627
      %629 = vdwg.mxu0
      %630 = vmatpush.msra.mxu0 %v569
      %631 = vmatpush.msra.mxu0 %v568
      %632 = vmatpush.msra.mxu0 %v567
      %633 = vmatpush.msra.mxu0 %v566
      %634 = vmatpush.msra.mxu0 %v565
      %635 = vmatpush.msra.mxu0 %v564
      %636 = vmatpush.msra.mxu0 %v563
      %637 = vmatpush.msra.mxu0 %v562
      %638 = vmatpush.msra.mxu0 %v561
      %639 = vmatpush.msra.mxu0 %v560
      %640 = vmatpush.msra.mxu0 %v559
      %641 = vmatpush.msra.mxu0 %v558
      %642 = vmatpush.msra.mxu0 %v557
      %643 = vmatpush.msra.mxu0 %v556
      %644 = vmatpush.msra.mxu0 %v555
      %645 = vmatpush.msra.mxu0 %v554
      %646 = vmatmul.f32.gmra.mxu0 %v505
      %v647 = vpop.f32.mrf.mxu0
      %v648 = vadd.f32 %v628, %v647
      %649 = vdwg.mxu0
      %650 = vst [vmem:[%s236] sm:$0xff] %v648
      %p651 = scmp.lt.s32.totalorder %s16, 1
      %s652 = scalar_select %p651, %s16, 1
      %s653 = smul.addr %s652, 8
      %s654 = scalar_lea.vmem %s5, %s653
      // Predicated region
      $region41: #{moe_layer_forward.1} parent=39 // pred_check
        %p655 = pneg %p149
      $region42: #{moe_layer_forward.1} parent=39 // pred_check_branch
        %657 = sbr.rel (%p655) target = $region44
      $region43: #{moe_layer_forward.1} parent=39 // pred_region
        _
      $region44: #{moe_layer_forward.1} parent=39 // pred_fallthru
        _
    $region40: #{moe_layer_forward.1} parent=5 // pred_fallthru
      _
    %p658 = scmp.le.s32.totalorder 2, %s11
    // Predicated region
    $region45: #{moe_layer_forward.1} parent=5 // pred_check
      %p659 = pneg %p658
    $region46: #{moe_layer_forward.1} parent=5 // pred_check_branch
      %661 = sbr.rel (%p659) target = $region48
    $region47: #{moe_layer_forward.1} parent=5 // pred_region
      %s662 = ssub.s32 %s11, 2
      // Predicated region
      $region49: #{moe_layer_forward.1} parent=47 // pred_check
        %p663 = pneg %p155
      $region50: #{moe_layer_forward.1} parent=47 // pred_check_branch
        %665 = sbr.rel (%p663) target = $region52
      $region51: #{moe_layer_forward.1} parent=47 // pred_region
        %p666 = scmp.lt.s32.totalorder %s17, 1
        %s667 = scalar_select %p666, %s17, 1
        %s668 = smul.addr %s667, 8
        %s669 = scalar_lea.vmem %s5, %s668
      $region52: #{moe_layer_forward.1} parent=47 // pred_fallthru
        _
    $region48: #{moe_layer_forward.1} parent=5 // pred_fallthru
      _
  $region6: #{moe_layer_forward.1} parent=0 // loop_footer
    %s15 = sadd.s32 1, %s11
  $region7: #{moe_layer_forward.1} parent=0 // loop_footer_branch
    %10 = sbr.rel target = $region3
  $region8: #{moe_layer_forward.1} parent=0 // loop_exit
    _

</llo_original>
